<compile_context>
chip_gen: v7x
topology: tpu7x:2x2x1
jax: 0.10.0
libtpu: 0.0.40
codegen_flags: <defaults>
</compile_context>

<pallas_src>
import functools

import jax
import jax.numpy as jnp
from jax.experimental import pallas as pl
from jax.experimental.pallas import tpu as pltpu


def _soft_target_kernel(s_ref, t_ref, o_ref, acc_ref, *,
                        inv_T: float, scale: float,
                        batch: int, block_b: int, need_mask: bool):
    i = pl.program_id(0)

    @pl.when(i == 0)
    def _():
        acc_ref[...] = jnp.zeros_like(acc_ref)

    inv_t = jnp.float32(inv_T)
    # Upcast to f32 in-kernel (inputs may be bf16 in HBM); multiply, not divide.
    s = s_ref[...].astype(jnp.float32) * inv_t
    t = t_ref[...].astype(jnp.float32) * inv_t

    # log_softmax over the class dim for the student logits.
    s_max = jnp.max(s, axis=1, keepdims=True)
    s_shift = s - s_max
    s_lse = jnp.log(jnp.sum(jnp.exp(s_shift), axis=1, keepdims=True))
    log_p_s = s_shift - s_lse

    # softmax (and its log) over the class dim for the teacher logits.
    t_max = jnp.max(t, axis=1, keepdims=True)
    t_shift = t - t_max
    t_exp = jnp.exp(t_shift)
    t_sum = jnp.sum(t_exp, axis=1, keepdims=True)
    log_t_sum = jnp.log(t_sum)
    # Per-row reciprocal (TB elements) + broadcast VPU mul instead of a
    # full-tile divide.
    p_t = t_exp * pl.reciprocal(t_sum, approx=False)
    log_p_t = t_shift - log_t_sum

    # F.kl_div(input=log_p_s, target=p_t): p_t * (log p_t - log p_s)
    kl = p_t * (log_p_t - log_p_s)

    if need_mask:
        # Ragged last block: zero out contributions from out-of-bounds rows.
        row = jax.lax.broadcasted_iota(jnp.int32, (kl.shape[0], 1), 0) + i * block_b
        kl = jnp.where(row < batch, kl, 0.0)

    acc_ref[...] += jnp.sum(kl, keepdims=True)

    @pl.when(i == pl.num_programs(0) - 1)
    def _():
        # reduction='batchmean' -> sum / B, then * T^2
        o_ref[0, 0] = acc_ref[0, 0] * jnp.float32(scale)


def soft_target_loss(out_s: jax.Array, out_t: jax.Array, T: float, *,
                     block_b: int = 256,
                     vmem_block_budget_bytes: int = 2 * 1024 * 1024) -> jax.Array:
    assert out_s.shape == out_t.shape and out_s.ndim == 2
    B, C = out_s.shape

    # Batch tile: multiple of 8 sublanes (or the full batch), bounded so a
    # single f32 block stays within the per-block VMEM budget.
    rows_budget = max(8, vmem_block_budget_bytes // (4 * C))
    TB = min(block_b, rows_budget, B)
    if TB < B:
        TB = max(8, (TB // 8) * 8)
    grid_b = pl.cdiv(B, TB)
    need_mask = (B % TB) != 0

    kernel = functools.partial(
        _soft_target_kernel,
        inv_T=1.0 / float(T),
        scale=float(T) * float(T) / float(B),
        batch=B,
        block_b=TB,
        need_mask=need_mask,
    )

    out = pl.pallas_call(
        kernel,
        out_shape=jax.ShapeDtypeStruct((1, 1), jnp.float32),
        grid_spec=pltpu.PrefetchScalarGridSpec(
            num_scalar_prefetch=0,
            grid=(grid_b,),
            in_specs=[
                pl.BlockSpec((TB, C), lambda i: (i, 0)),
                pl.BlockSpec((TB, C), lambda i: (i, 0)),
            ],
            out_specs=pl.BlockSpec(memory_space=pltpu.SMEM),
            scratch_shapes=[pltpu.VMEM((1, 1), jnp.float32)],
        ),
        compiler_params=pltpu.CompilerParams(
            dimension_semantics=("arbitrary",)),
    )(out_s, out_t)
    return out[0, 0]


def _reference(out_s, out_t, T):
    # Pure-JAX reference mirroring the PyTorch semantics (NaN-safe form).
    s = out_s.astype(jnp.float32) / T
    t = out_t.astype(jnp.float32) / T
    log_p_s = jax.nn.log_softmax(s, axis=1)
    log_p_t = jax.nn.log_softmax(t, axis=1)
    p_t = jnp.exp(log_p_t)
    kl = p_t * (log_p_t - log_p_s)
    return jnp.sum(kl) / out_s.shape[0] * T * T


if __name__ == "__main__":
    key = jax.random.PRNGKey(0)
    k1, k2, k3, k4 = jax.random.split(key, 4)

    # Test 1: tiny shape consistent with the module (single block, single step).
    B, C, T = 8, 32, 4.0
    out_s = jax.random.normal(k1, (B, C), dtype=jnp.float32)
    out_t = jax.random.normal(k2, (B, C), dtype=jnp.float32)
    loss = soft_target_loss(out_s, out_t, T)
    jax.block_until_ready(loss)
    ref = _reference(out_s, out_t, T)
    assert jnp.allclose(loss, ref, rtol=1e-5, atol=1e-5), (loss, ref)

    # Test 2: multi-block grid with a ragged last batch tile (exercises the
    # cross-step accumulator, pl.when finalize, and row masking).
    B2, C2, T2 = 50, 200, 2.0
    s2 = jax.random.normal(k3, (B2, C2), dtype=jnp.float32)
    t2 = jax.random.normal(k4, (B2, C2), dtype=jnp.float32)
    loss2 = soft_target_loss(s2, t2, T2, block_b=16)
    jax.block_until_ready(loss2)
    ref2 = _reference(s2, t2, T2)
    assert jnp.allclose(loss2, ref2, rtol=1e-5, atol=1e-5), (loss2, ref2)

    # Test 3: bf16 logits in HBM, f32 math inside the kernel.
    s3 = s2.astype(jnp.bfloat16)
    t3 = t2.astype(jnp.bfloat16)
    loss3 = soft_target_loss(s3, t3, T2, block_b=16)
    jax.block_until_ready(loss3)
    ref3 = _reference(s3, t3, T2)
    assert jnp.allclose(loss3, ref3, rtol=1e-3, atol=1e-3), (loss3, ref3)

    print("KERNEL_OK")
</pallas_src>

<mosaic_0001>
module attributes {stable_mosaic.version = 11 : i64} {
  func.func @_soft_target_kernel(%arg0: i32, %arg1: memref<8x32xf32, #tpu.memory_space<vmem>>, %arg2: memref<8x32xf32, #tpu.memory_space<vmem>>, %arg3: memref<1x1xf32, #tpu.memory_space<smem>>, %arg4: memref<1x1xf32, #tpu.memory_space<vmem>>) attributes {dimension_semantics = [#tpu.dimension_semantics<arbitrary>], iteration_bounds = array<i64: 1>, scalar_prefetch = 0 : i64, scratch_operands = 1 : i64, tpu.core_type = #tpu.core_type<tc>, window_params = [{transform_indices = @transform_0, window_bounds = array<i64: 8, 32>}, {transform_indices = @transform_1, window_bounds = array<i64: 8, 32>}, {transform_indices = @transform_2, window_bounds = array<i64: 1, 1>}]} {
    %c0_i32 = arith.constant 0 : i32
    %0 = arith.cmpi eq, %arg0, %c0_i32 : i32
    %1 = arith.extui %0 : i1 to i32
    %c0_i32_0 = arith.constant 0 : i32
    %2 = arith.cmpi ne, %1, %c0_i32_0 : i32
    scf.if %2 {
      %cst_16 = arith.constant 0.000000e+00 : f32
      %45 = vector.broadcast %cst_16 : f32 to vector<1x1xf32>
      %c0_17 = arith.constant 0 : index
      %c0_18 = arith.constant 0 : index
      %46 = vector.load %arg4[%c0_17, %c0_18] : memref<1x1xf32, #tpu.memory_space<vmem>>, vector<1x1xf32>
      tpu.vector_store %arg4[%c0_17, %c0_18], %45 {strides = array<i32>} : memref<1x1xf32, #tpu.memory_space<vmem>>, vector<1x1xf32>,
    } else {
    }
    %c0 = arith.constant 0 : index
    %c0_1 = arith.constant 0 : index
    %3 = vector.load %arg1[%c0, %c0_1] : memref<8x32xf32, #tpu.memory_space<vmem>>, vector<8x32xf32>
    %cst = arith.constant 2.500000e-01 : f32
    %4 = vector.broadcast %cst : f32 to vector<8x32xf32>
    %5 = arith.mulf %3, %4 : vector<8x32xf32>
    %c0_2 = arith.constant 0 : index
    %c0_3 = arith.constant 0 : index
    %6 = vector.load %arg2[%c0_2, %c0_3] : memref<8x32xf32, #tpu.memory_space<vmem>>, vector<8x32xf32>
    %cst_4 = arith.constant 2.500000e-01 : f32
    %7 = vector.broadcast %cst_4 : f32 to vector<8x32xf32>
    %8 = arith.mulf %6, %7 : vector<8x32xf32>
    %cst_5 = arith.constant dense<0xFF800000> : vector<8xf32>
    %9 = vector.multi_reduction <maximumf>, %5, %cst_5 [1] : vector<8x32xf32> to vector<8xf32>
    %10 = vector.shape_cast %9 : vector<8xf32> to vector<8x1xf32>
    %11 = vector.broadcast %10 : vector<8x1xf32> to vector<8x32xf32>
    %12 = arith.subf %5, %11 : vector<8x32xf32>
    %13 = math.exp %12 : vector<8x32xf32>
    %cst_6 = arith.constant dense<0.000000e+00> : vector<8xf32>
    %14 = vector.multi_reduction <add>, %13, %cst_6 [1] : vector<8x32xf32> to vector<8xf32>
    %15 = vector.shape_cast %14 : vector<8xf32> to vector<8x1xf32>
    %16 = math.log %15 : vector<8x1xf32>
    %17 = vector.broadcast %16 : vector<8x1xf32> to vector<8x32xf32>
    %18 = arith.subf %12, %17 : vector<8x32xf32>
    %cst_7 = arith.constant dense<0xFF800000> : vector<8xf32>
    %19 = vector.multi_reduction <maximumf>, %8, %cst_7 [1] : vector<8x32xf32> to vector<8xf32>
    %20 = vector.shape_cast %19 : vector<8xf32> to vector<8x1xf32>
    %21 = vector.broadcast %20 : vector<8x1xf32> to vector<8x32xf32>
    %22 = arith.subf %8, %21 : vector<8x32xf32>
    %23 = math.exp %22 : vector<8x32xf32>
    %cst_8 = arith.constant dense<0.000000e+00> : vector<8xf32>
    %24 = vector.multi_reduction <add>, %23, %cst_8 [1] : vector<8x32xf32> to vector<8xf32>
    %25 = vector.shape_cast %24 : vector<8xf32> to vector<8x1xf32>
    %26 = math.log %25 : vector<8x1xf32>
    %27 = tpu.reciprocal %25 : vector<8x1xf32> -> vector<8x1xf32>
    %28 = vector.broadcast %27 : vector<8x1xf32> to vector<8x32xf32>
    %29 = arith.mulf %23, %28 : vector<8x32xf32>
    %30 = vector.broadcast %26 : vector<8x1xf32> to vector<8x32xf32>
    %31 = arith.subf %22, %30 : vector<8x32xf32>
    %32 = arith.subf %31, %18 : vector<8x32xf32>
    %33 = arith.mulf %29, %32 : vector<8x32xf32>
    %c0_9 = arith.constant 0 : index
    %c0_10 = arith.constant 0 : index
    %34 = vector.load %arg4[%c0_9, %c0_10] : memref<1x1xf32, #tpu.memory_space<vmem>>, vector<1x1xf32>
    %35 = vector.shape_cast %33 : vector<8x32xf32> to vector<1x8x32xf32>
    %cst_11 = arith.constant dense<0.000000e+00> : vector<1xf32>
    %36 = vector.multi_reduction <add>, %35, %cst_11 [1, 2] : vector<1x8x32xf32> to vector<1xf32>
    %37 = vector.shape_cast %36 : vector<1xf32> to vector<1x1x1xf32>
    %38 = vector.extract %37[0, 0, 0] : f32 from vector<1x1x1xf32>
    %39 = vector.broadcast %38 : f32 to vector<1x1xf32>
    %40 = arith.addf %34, %39 : vector<1x1xf32>
    %c0_12 = arith.constant 0 : index
    %c0_13 = arith.constant 0 : index
    %41 = vector.load %arg4[%c0_12, %c0_13] : memref<1x1xf32, #tpu.memory_space<vmem>>, vector<1x1xf32>
    tpu.vector_store %arg4[%c0_12, %c0_13], %40 {strides = array<i32>} : memref<1x1xf32, #tpu.memory_space<vmem>>, vector<1x1xf32>,
    %c0_i32_14 = arith.constant 0 : i32
    %42 = arith.cmpi eq, %arg0, %c0_i32_14 : i32
    %43 = arith.extui %42 : i1 to i32
    %c0_i32_15 = arith.constant 0 : i32
    %44 = arith.cmpi ne, %43, %c0_i32_15 : i32
    scf.if %44 {
      %c0_16 = arith.constant 0 : index
      %c0_17 = arith.constant 0 : index
      %45 = vector.load %arg4[%c0_16, %c0_17] : memref<1x1xf32, #tpu.memory_space<vmem>>, vector<1x1xf32>
      %46 = vector.extract %45[0, 0] : f32 from vector<1x1xf32>
      %cst_18 = arith.constant 2.000000e+00 : f32
      %47 = arith.mulf %46, %cst_18 : f32
      %c0_19 = arith.constant 0 : index
      %c0_20 = arith.constant 0 : index
      %48 = memref.load %arg3[%c0_19, %c0_20] : memref<1x1xf32, #tpu.memory_space<smem>>
      memref.store %47, %arg3[%c0_19, %c0_20] : memref<1x1xf32, #tpu.memory_space<smem>>
    } else {
    }
    return
  }
  func.func @transform_0(%arg0: i32) -> (i32, i32) {
    %c0_i32 = arith.constant 0 : i32
    %c0_i32_0 = arith.constant 0 : i32
    return %arg0, %c0_i32 : i32, i32
  }
  func.func @transform_1(%arg0: i32) -> (i32, i32) {
    %c0_i32 = arith.constant 0 : i32
    %c0_i32_0 = arith.constant 0 : i32
    return %arg0, %c0_i32 : i32, i32
  }
  func.func @transform_2(%arg0: i32) -> (i32, i32) {
    %c0_i32 = arith.constant 0 : i32
    %c0_i32_0 = arith.constant 0 : i32
    %c0_i32_1 = arith.constant 0 : i32
    return %c0_i32, %c0_i32_0 : i32, i32
  }
}

</mosaic_0001>

<llo_original>
// kernel: tpu_custom_call.1
$region0: #{tpu_custom_call.1}
  #allocation0 [shape = 'u32[]', space=smem, size = 0x4, offset = 0x4, fixed_abs, tag = 'smem constant byte address 0x4 - core index']
  #allocation1 [shape = 'u32[144,128]{1,0:T(1,128)}', space=vmem, size = 0x12000, scoped, tag = 'internal scratch']
  #allocation2 [shape = 'f32[1,1]{1,0:T(1,128)}', space=vmem, size = 0x200, scoped, tag = 'scratch operand']
  %s0 = inlined_call_operand.hbm [shape: f32[8,32], index: 0, kind: input, shape index: {}]
  %s1 = inlined_call_operand.hbm [shape: f32[8,32], index: 1, kind: input, shape index: {}]
  %s2 = inlined_call_operand.hbm [shape: f32[1,1], index: 2, kind: output, shape index: {}]
  %s3 = sld [smem:[#allocation0]]
  $region34: #{tpu_custom_call.1} parent=0
    _
  %s5 = ssub.s32 1, %s3
  %s6 = scalar_select 0, %s5, %s3
  $region1: #{tpu_custom_call.1} parent=0
    #allocation3 [shape = 'u8[4096]{0}', space=vmem, size = 0x1000, scoped, tag = 'input window, operand 0, single buffered']
    #allocation4 [shape = 's32[1]{0}', space=sflag, size = 0x4, scoped, tag = 'scoped memory for tpu_custom_call.1']
    #allocation5 [shape = 's32[1]{0}', space=sflag, size = 0x4, scoped, tag = 'scoped memory for tpu_custom_call.1']
    #allocation6 [shape = 'u8[4096]{0}', space=vmem, size = 0x1000, scoped, tag = 'input window, operand 1, single buffered']
    #allocation7 [shape = 's32[1]{0}', space=sflag, size = 0x4, scoped, tag = 'scoped memory for tpu_custom_call.1']
    #allocation8 [shape = 'u8[512]{0}', space=smem, size = 0x200, scoped, tag = 'output window, operand 0, single buffered']
    %7 = vsyncpa [#allocation4], 0
    %8 = vsyncpa [#allocation7], 0
    %9 = vsyncpa [#allocation5], 0
    // Predicated region
    $region2: #{tpu_custom_call.1} parent=1 // pred_check
      _
    $region3: #{tpu_custom_call.1} parent=1 // pred_check_branch
      %11 = sbr.rel (0) target = $region5
    $region4: #{tpu_custom_call.1} parent=1 // pred_region
      %s13 = ssub.s32 128, 128
      %14 = vsyncadd [#allocation4], %s13
      %s16 = sshll.u32 [#allocation3], 4
      %s17 = int_to_ptr.vmem [resolvable:$true] %s16
      %19 = dma.hbm_to_vmem [thread:$0]  %s0, 128, %s17, [#allocation4]
    $region5: #{tpu_custom_call.1} parent=1 // pred_fallthru
      _
    // Predicated region
    $region6: #{tpu_custom_call.1} parent=1 // pred_check
      _
    $region7: #{tpu_custom_call.1} parent=1 // pred_check_branch
      %21 = sbr.rel (0) target = $region9
    $region8: #{tpu_custom_call.1} parent=1 // pred_region
      %s23 = ssub.s32 128, 128
      %24 = vsyncadd [#allocation7], %s23
      %s26 = sshll.u32 [#allocation6], 4
      %s27 = int_to_ptr.vmem [resolvable:$true] %s26
      %29 = dma.hbm_to_vmem [thread:$0]  %s1, 128, %s27, [#allocation7]
    $region9: #{tpu_custom_call.1} parent=1 // pred_fallthru
      _
    // Predicated region
    $region10: #{tpu_custom_call.1} parent=1 // pred_check
      _
    $region11: #{tpu_custom_call.1} parent=1 // pred_check_branch
      %31 = sbr.rel (0) target = $region13
    $region12: #{tpu_custom_call.1} parent=1 // pred_region
      %32 = dma.done [#allocation4], 128
    $region13: #{tpu_custom_call.1} parent=1 // pred_fallthru
      _
    // Predicated region
    $region14: #{tpu_custom_call.1} parent=1 // pred_check
      _
    $region15: #{tpu_custom_call.1} parent=1 // pred_check_branch
      %34 = sbr.rel (0) target = $region17
    $region16: #{tpu_custom_call.1} parent=1 // pred_region
      %35 = dma.done [#allocation7], 128
    $region17: #{tpu_custom_call.1} parent=1 // pred_fallthru
      _
    %p36 = scmp.eq.s32.totalorder 0, 0
    // Predicated region
    $region18: #{tpu_custom_call.1} parent=1 // pred_check
      %p37 = pneg %p36
    $region19: #{tpu_custom_call.1} parent=1 // pred_check_branch
      %39 = sbr.rel (%p37) target = $region21
    $region20: #{tpu_custom_call.1} parent=1 // pred_region
      %vm40 = vcmask 0
      %41 = vst.msk [vmem:[#allocation2] sm:$0x1] %vm40, 0.0
    $region21: #{tpu_custom_call.1} parent=1 // pred_fallthru
      _
    %v42 = vld [vmem:[#allocation3] sm:$0xff]
    %v43 = vmul.f32 %v42, 0.25
    %v44 = vld [vmem:[#allocation6] sm:$0xff]
    %v45 = vmul.f32 %v44, 0.25
    %vm46 = vcmask 261120
    %v47 = vsel %vm46, %v43, -inf
    %48 = vmax.xlane.f32.xlu0 %v47
    %v49 = vpop.xlane.xlu0 %48
    %v50 = vsub.f32 %v43, %v49
    %v51 = vmul.f32 %v50, 1.442695
    %v52 = vpow.pop %v51
    %v53 = vsel %vm46, %v52, 0.0
    %54 = vadd.xlane.f32.xlu0 %v53
    %v55 = vpop.xlane.xlu0 %54
    %v56 = vlog2.pop %v55
    %v57 = vmul.f32 %v56, 0.6931472
    %v58 = vsub.f32 %v50, %v57
    %v59 = vsel %vm46, %v45, -inf
    %60 = vmax.xlane.f32.xlu0 %v59
    %v61 = vpop.xlane.xlu0 %60
    %v62 = vsub.f32 %v45, %v61
    %v63 = vmul.f32 %v62, 1.442695
    %v64 = vpow.pop %v63
    %v65 = vsel %vm46, %v64, 0.0
    %66 = vadd.xlane.f32.xlu0 %v65
    %v67 = vpop.xlane.xlu0 %66
    %v68 = vlog2.pop %v67
    %v69 = vmul.f32 %v68, 0.6931472
    %v70 = vrcp.pop %v67
    %v71 = vmul.f32 %v64, %v70
    %v72 = vsub.f32 %v62, %v69
    %v73 = vsub.f32 %v72, %v58
    %v74 = vmul.f32 %v71, %v73
    %v75 = vld [vmem:[#allocation2] sm:$0x1]
    %v76 = vsel %vm46, %v74, 0.0
    %77 = vadd.xlane.f32.xlu0 %v76
    %v78 = vpop.xlane.xlu0 %77
    %v79 = vrot.slane %v78, 4
    %v80 = vadd.f32 %v78, %v79
    %v81 = vrot.slane %v80, 2
    %v82 = vadd.f32 %v80, %v81
    %v83 = vrot.slane %v82, 1
    %v84 = vadd.f32 %v82, %v83
    %s85 = vtos %v84
    %v86 = vstv %s85
    %v87 = vadd.f32 %v75, %v86
    %vm88 = vcmask 0
    %89 = vst.msk [vmem:[#allocation2] sm:$0x1] %vm88, %v87
    // Predicated region
    $region22: #{tpu_custom_call.1} parent=1 // pred_check
      %p90 = pneg %p36
    $region23: #{tpu_custom_call.1} parent=1 // pred_check_branch
      %92 = sbr.rel (%p90) target = $region25
    $region24: #{tpu_custom_call.1} parent=1 // pred_region
      %v93 = vld [vmem:[#allocation2] sm:$0x1]
      %s94 = vtos %v93
      %s95 = smul.f32 %s94, 2.0
      %s96 = scalar_lea.smem [#allocation8], 0
      %97 = sst [smem:[%s96]] %s95
    $region25: #{tpu_custom_call.1} parent=1 // pred_fallthru
      _
    // Predicated region
    $region26: #{tpu_custom_call.1} parent=1 // pred_check
      _
    $region27: #{tpu_custom_call.1} parent=1 // pred_check_branch
      %99 = sbr.rel (0) target = $region29
    $region28: #{tpu_custom_call.1} parent=1 // pred_region
      %s101 = ssub.s32 16, 16
      %102 = vsyncadd [#allocation5], %s101
      %105 = dma.smem_to_hbm [#allocation8], 16, %s2, [#allocation5]
    $region29: #{tpu_custom_call.1} parent=1 // pred_fallthru
      _
    // Predicated region
    $region30: #{tpu_custom_call.1} parent=1 // pred_check
      _
    $region31: #{tpu_custom_call.1} parent=1 // pred_check_branch
      %107 = sbr.rel (0) target = $region33
    $region32: #{tpu_custom_call.1} parent=1 // pred_region
      %108 = dma.done [#allocation5], 16
    $region33: #{tpu_custom_call.1} parent=1 // pred_fallthru
      _
    %109 = sfence
    %110 = vsyncpa [#allocation4], 1
    %111 = vsyncpa [#allocation7], 1
    %112 = vsyncpa [#allocation5], 1

</llo_original>
